<compile_context>
chip_gen: v5e
topology: v5e:2x2
jax: 0.10.0
libtpu: 0.0.40
codegen_flags: <defaults>
</compile_context>

<pallas_src>
import functools
from typing import NamedTuple, Optional

import jax
import jax.numpy as jnp
from jax.experimental import pallas as pl
from jax.experimental.pallas import tpu as pltpu

LANE = 128  # all feature axes are padded to one full TPU lane width


# ----------------------------------------------------------------------------
# Fused injection-block kernels
# ----------------------------------------------------------------------------
def _inject_core(xc, w0, b0, w1, b1, w2, b2):
    """Shared compute: block-diag first layer + FFN; bf16 MXU, f32 accumulate."""
    xcb = xc.astype(jnp.bfloat16)
    p0 = jnp.maximum(
        jnp.dot(xcb, w0, preferred_element_type=jnp.float32) + b0, 0.0)
    h = jnp.maximum(
        jnp.dot(p0.astype(jnp.bfloat16), w1, preferred_element_type=jnp.float32) + b1,
        0.0)
    return jnp.dot(h.astype(jnp.bfloat16), w2,
                   preferred_element_type=jnp.float32) + b2


def _iib_kernel(x_dim, xc_ref, w0_ref, b0_ref, w1_ref, b1_ref, w2_ref, b2_ref,
                out_ref):
    """InputInjectionBlock: residual is the x part of xc (no extra DMA stream)."""
    xc = xc_ref[...]
    adj = _inject_core(xc, w0_ref[...], b0_ref[...], w1_ref[...], b1_ref[...],
                       w2_ref[...], b2_ref[...])
    col = jax.lax.broadcasted_iota(jnp.int32, xc.shape, 1)
    residual = jnp.where(col < x_dim, xc, 0.0)
    out_ref[...] = residual + adj


def _oib_kernel(xc_ref, res_ref, w0_ref, b0_ref, w1_ref, b1_ref, w2_ref, b2_ref,
                out_ref):
    """OutputInjectionBlock: residual is the original (padded) logits."""
    adj = _inject_core(xc_ref[...], w0_ref[...], b0_ref[...], w1_ref[...],
                       b1_ref[...], w2_ref[...], b2_ref[...])
    out_ref[...] = res_ref[...] + adj


def _round_up(n, m):
    return ((n + m - 1) // m) * m


def _injection_forward(p, x2, c2, residual, x_dim, out_dim):
    """Run the fused injection block on 2-D row slabs.

    x2: [R, x_dim] f32, c2: [R, cov_dim] f32, residual: [R, out_dim] f32 or None
    (None => residual is x2 itself, recovered in-kernel).  Returns [R, out_dim].
    """
    R = x2.shape[0]
    cdim = c2.shape[1]

    # One big row tile (whole problem per grid step); pad rows to sublane multiple.
    row_tile = min(_round_up(R, 8), 512)
    n_pad = _round_up(R, row_tile)

    pad_cols = LANE - x_dim - cdim
    xc = jnp.concatenate(
        [x2.astype(jnp.float32), c2.astype(jnp.float32),
         jnp.zeros((R, pad_cols), jnp.float32)], axis=1)
    xc = jnp.pad(xc, ((0, n_pad - R), (0, 0)))

    row_spec = pl.BlockSpec((row_tile, LANE), lambda i: (i, 0))
    w_spec = pl.BlockSpec((LANE, LANE), lambda i: (0, 0))
    b_spec = pl.BlockSpec((1, LANE), lambda i: (0, 0))

    if residual is None:
        kernel = functools.partial(_iib_kernel, x_dim)
        row_inputs = (xc,)
    else:
        res = jnp.pad(residual.astype(jnp.float32),
                      ((0, n_pad - R), (0, LANE - residual.shape[1])))
        kernel = _oib_kernel
        row_inputs = (xc, res)

    out = pl.pallas_call(
        kernel,
        out_shape=jax.ShapeDtypeStruct((n_pad, LANE), jnp.float32),
        grid=(n_pad // row_tile,),
        in_specs=[row_spec] * len(row_inputs)
                 + [w_spec, b_spec, w_spec, b_spec, w_spec, b_spec],
        out_specs=row_spec,
        compiler_params=pltpu.CompilerParams(dimension_semantics=("parallel",)),
    )(*row_inputs, p["w0"], p["b0"], p["w1"], p["b1"], p["w2"], p["b2"])
    return out[:R, :out_dim]


# ----------------------------------------------------------------------------
# Parameter construction (synthetic weights, no checkpoint load).
# Weights are stored pre-transposed ([in, out]) and packed into 128x128
# zero-padded, block-diagonal layouts so the kernel works on lane-dense slabs.
# ----------------------------------------------------------------------------
def _linear_params(key, in_dim, out_dim):
    kw, kb = jax.random.split(key)
    bound = 1.0 / jnp.sqrt(jnp.float32(in_dim))
    w = jax.random.uniform(kw, (in_dim, out_dim), jnp.float32, -bound, bound)
    b = jax.random.uniform(kb, (1, out_dim), jnp.float32, -bound, bound)
    return w, b


def make_injection_params(key, x_dim, cov_dim, hidden_dim, out_dim):
    k = jax.random.split(key, 4)
    wx, bx = _linear_params(k[0], x_dim, hidden_dim)          # W_emb / W_out
    wc, bc = _linear_params(k[1], cov_dim, hidden_dim)        # W_cov
    w1, b1 = _linear_params(k[2], 2 * hidden_dim, hidden_dim)  # FFN.linear1
    w2, b2 = _linear_params(k[3], hidden_dim, out_dim)         # FFN.linear2

    # Fused first layer: [x | c] @ [[Wx, 0], [0, Wc]] == [x@Wx | c@Wc]
    w0p = jnp.zeros((LANE, LANE), jnp.float32)
    w0p = w0p.at[:x_dim, :hidden_dim].set(wx)
    w0p = w0p.at[x_dim:x_dim + cov_dim, hidden_dim:2 * hidden_dim].set(wc)
    b0p = jnp.zeros((1, LANE), jnp.float32)
    b0p = b0p.at[:, :hidden_dim].set(bx)
    b0p = b0p.at[:, hidden_dim:2 * hidden_dim].set(bc)

    w1p = jnp.zeros((LANE, LANE), jnp.float32).at[:2 * hidden_dim, :hidden_dim].set(w1)
    b1p = jnp.zeros((1, LANE), jnp.float32).at[:, :hidden_dim].set(b1)
    w2p = jnp.zeros((LANE, LANE), jnp.float32).at[:hidden_dim, :out_dim].set(w2)
    b2p = jnp.zeros((1, LANE), jnp.float32).at[:, :out_dim].set(b2)

    return {"w0": w0p.astype(jnp.bfloat16), "b0": b0p,
            "w1": w1p.astype(jnp.bfloat16), "b1": b1p,
            "w2": w2p.astype(jnp.bfloat16), "b2": b2p}
    # NOTE: OutputInjectionBlock.forecasting_head is never used in forward(); omitted.


# ----------------------------------------------------------------------------
# AdaptedXModel forward (single jit; decode loop is a lax.scan; 50 trajectories
# are vectorized into the row dimension so each decode step is one Pallas call).
# ----------------------------------------------------------------------------
class ModelConfig(NamedTuple):
    covariate_dim: int
    d_model: int
    hidden_dim: int
    output_dim: int
    n_traj: int
    temperature: float
    top_k: Optional[int]


def _inject_input_covariates(iibp, token_embeddings, past_covariates, cfg):
    min_len = min(token_embeddings.shape[1], past_covariates.shape[1])
    x = token_embeddings[:, :min_len]
    c = past_covariates[:, :min_len]
    B, S, D = x.shape
    out2 = _injection_forward(iibp,
                              x.reshape(B * S, D),
                              c.reshape(B * S, cfg.covariate_dim),
                              residual=None, x_dim=D, out_dim=D)
    return out2.reshape(B, S, D)


def _autoregressive_sample(params, embeddings, future_covariates, key, cfg):
    B, S, D = embeddings.shape
    V = cfg.output_dim
    P = V                      # prediction length == output_dim (as in the module)
    n_traj = cfg.n_traj        # hard-coded 50 in the original module
    R = B * n_traj

    # Replicate context across trajectories and pre-allocate the full buffer.
    ctx0 = jnp.broadcast_to(embeddings[:, None], (B, n_traj, S, D)).reshape(R, S, D)
    ctx = jnp.pad(ctx0.astype(jnp.float32), ((0, 0), (0, P), (0, 0)))

    if future_covariates is not None:
        fc = (future_covariates.mean(axis=1) if future_covariates.shape[1] != 1
              else future_covariates[:, 0])                      # [B, C]
        fcov = jnp.broadcast_to(fc[:, None, :], (B, n_traj, cfg.covariate_dim)
                                ).reshape(R, cfg.covariate_dim).astype(jnp.float32)
    else:
        fcov = None

    pos = jnp.arange(S + P)

    def step_fn(carry, step):
        ctx, key = carry
        length = S + step
        # --- frozen model_wrapper stub: forward_with_embeddings ---------------
        valid = (pos < length).astype(jnp.float32)[None, :, None]
        pooled = jnp.sum(ctx * valid, axis=1) / length.astype(jnp.float32)
        h = jnp.tanh(pooled @ params["w_h"] + params["b_h"])          # [R, D]
        logits = h @ params["w_head"] + params["b_head"]              # [R, V]
        # --- OutputInjectionBlock (Pallas) ------------------------------------
        if fcov is not None:
            adjusted = _injection_forward(params["oib"], h, fcov, logits,
                                          x_dim=D, out_dim=V)
        else:
            adjusted = logits
        # --- sampling ----------------------------------------------------------
        key, sk = jax.random.split(key)
        lg = adjusted / cfg.temperature
        if cfg.top_k is not None:
            vals, _ = jax.lax.top_k(lg, cfg.top_k)
            lg = jnp.where(lg >= vals[..., -1:], lg, -1e9)
        # TODO(synk): torch.multinomial replaced with jax.random.categorical.
        next_token = jax.random.categorical(sk, lg, axis=-1)          # [R]
        next_emb = params["token_emb"][next_token]                    # [R, D]
        ctx = jax.lax.dynamic_update_slice(ctx, next_emb[:, None, :],
                                           (0, length, 0))
        return (ctx, key), (next_token, adjusted)

    (_, _), (tokens, step_logits) = jax.lax.scan(step_fn, (ctx, key), jnp.arange(P))

    tokens = jnp.transpose(tokens, (1, 0)).reshape(B, n_traj, P)      # [B, 50, P]
    values = params["centers"][tokens]          # tokenizer.output_transform stub
    # TODO(synk): the original code assigns a [B,P,1,V] stack into a [B,P] slot
    # (shape-inconsistent); we keep the final decode step's adjusted logits.
    last_logits = step_logits[-1].reshape(B, n_traj, V)
    return values, last_logits


@functools.partial(jax.jit, static_argnames=("cfg",))
def adapted_x_forward(params, input_data, past_covariates, future_covariates,
                      key, cfg):
    # --- frozen model_wrapper stub: get_input_embeddings ----------------------
    # TODO(synk): real Chronos model_wrapper is an external pretrained network;
    # replaced by a deterministic synthetic stub (plain jnp).
    embeddings = input_data[..., None] * params["w_in"] + params["b_in"]   # [B,S,D]
    # --- InputInjectionBlock (Pallas) ------------------------------------------
    if past_covariates is not None:
        embeddings = _inject_input_covariates(params["iib"], embeddings,
                                              past_covariates, cfg)
    # --- autoregressive sampling ------------------------------------------------
    outputs, logits = _autoregressive_sample(params, embeddings,
                                             future_covariates, key, cfg)
    return {"outputs": outputs, "logits": logits}


class AdaptedXModelJAX:
    def __init__(self, key, covariate_dim, d_model=32, hidden_dim=32,
                 output_dim=8, temperature=1.0, top_k=None, num_samples=20,
                 n_traj=50):
        self.cfg = ModelConfig(covariate_dim=covariate_dim, d_model=d_model,
                               hidden_dim=hidden_dim, output_dim=output_dim,
                               n_traj=n_traj, temperature=float(temperature),
                               top_k=top_k)
        self.num_samples = num_samples   # kept for API parity (unused, as in torch)

        ks = jax.random.split(key, 8)
        params = {}
        # XAdaptor adapter blocks (the only trainable compute).
        params["iib"] = make_injection_params(ks[0], d_model, covariate_dim,
                                              hidden_dim, d_model)
        params["oib"] = make_injection_params(ks[1], d_model, covariate_dim,
                                              hidden_dim, output_dim)
        # Frozen pretrained "model_wrapper" stand-in.
        params["w_in"] = jax.random.normal(ks[2], (d_model,), jnp.float32) * 0.1
        params["b_in"] = jax.random.normal(ks[3], (d_model,), jnp.float32) * 0.01
        wh, bh = _linear_params(ks[4], d_model, d_model)
        params["w_h"], params["b_h"] = wh, bh[0]
        whd, bhd = _linear_params(ks[5], d_model, output_dim)
        params["w_head"], params["b_head"] = whd, bhd[0]
        params["token_emb"] = jax.random.normal(ks[6], (output_dim, d_model),
                                                jnp.float32) * 0.1
        params["centers"] = jnp.linspace(-1.0, 1.0, output_dim, dtype=jnp.float32)
        self.params = params

    def forward(self, input_data, mask=None, past_covariates=None,
                future_covariates=None, key=None):
        del mask
        if key is None:
            key = jax.random.PRNGKey(0)
        return adapted_x_forward(self.params, input_data, past_covariates,
                                 future_covariates, key, self.cfg)


if __name__ == "__main__":
    key = jax.random.PRNGKey(0)
    k_model, k_data, k_pc, k_fc, k_samp = jax.random.split(key, 5)

    B, S = 2, 8
    covariate_dim = 4
    d_model = 32
    hidden_dim = 32
    output_dim = 8   # vocab size == prediction length (as in the module)

    model = AdaptedXModelJAX(k_model, covariate_dim=covariate_dim,
                             d_model=d_model, hidden_dim=hidden_dim,
                             output_dim=output_dim, temperature=1.0,
                             top_k=None, num_samples=20)

    input_data = jax.random.normal(k_data, (B, S), jnp.float32)
    past_covariates = jax.random.normal(k_pc, (B, S, covariate_dim), jnp.float32)
    future_covariates = jax.random.normal(k_fc, (B, 1, covariate_dim), jnp.float32)

    result = model.forward(input_data,
                           past_covariates=past_covariates,
                           future_covariates=future_covariates,
                           key=k_samp)
    jax.block_until_ready(result["outputs"])
    jax.block_until_ready(result["logits"])

    assert result["outputs"].shape == (B, 50, output_dim)
    assert result["logits"].shape == (B, 50, output_dim)
    assert jnp.all(jnp.isfinite(result["outputs"]))
    assert jnp.all(jnp.isfinite(result["logits"]))
    print("KERNEL_OK")
</pallas_src>

<mosaic_0001>
module attributes {stable_mosaic.version = 11 : i64} {
  func.func @_iib_kernel(%arg0: i32, %arg1: memref<16x128xf32, #tpu.memory_space<vmem>>, %arg2: memref<128x128xbf16, #tpu.memory_space<vmem>>, %arg3: memref<1x128xf32, #tpu.memory_space<vmem>>, %arg4: memref<128x128xbf16, #tpu.memory_space<vmem>>, %arg5: memref<1x128xf32, #tpu.memory_space<vmem>>, %arg6: memref<128x128xbf16, #tpu.memory_space<vmem>>, %arg7: memref<1x128xf32, #tpu.memory_space<vmem>>, %arg8: memref<16x128xf32, #tpu.memory_space<vmem>>) attributes {dimension_semantics = [#tpu.dimension_semantics<parallel>], iteration_bounds = array<i64: 1>, scalar_prefetch = 0 : i64, scratch_operands = 0 : i64, tpu.core_type = #tpu.core_type<tc>, window_params = [{transform_indices = @transform_0, window_bounds = array<i64: 16, 128>}, {pipeline_mode = #tpu.pipeline_mode<synchronous>, transform_indices = @transform_1, window_bounds = array<i64: 128, 128>}, {pipeline_mode = #tpu.pipeline_mode<synchronous>, transform_indices = @transform_2, window_bounds = array<i64: 1, 128>}, {pipeline_mode = #tpu.pipeline_mode<synchronous>, transform_indices = @transform_3, window_bounds = array<i64: 128, 128>}, {pipeline_mode = #tpu.pipeline_mode<synchronous>, transform_indices = @transform_4, window_bounds = array<i64: 1, 128>}, {pipeline_mode = #tpu.pipeline_mode<synchronous>, transform_indices = @transform_5, window_bounds = array<i64: 128, 128>}, {pipeline_mode = #tpu.pipeline_mode<synchronous>, transform_indices = @transform_6, window_bounds = array<i64: 1, 128>}, {transform_indices = @transform_7, window_bounds = array<i64: 16, 128>}]} {
    %c0 = arith.constant 0 : index
    %c0_0 = arith.constant 0 : index
    %0 = vector.load %arg1[%c0, %c0_0] : memref<16x128xf32, #tpu.memory_space<vmem>>, vector<16x128xf32>
    %c0_1 = arith.constant 0 : index
    %c0_2 = arith.constant 0 : index
    %1 = vector.load %arg2[%c0_1, %c0_2] : memref<128x128xbf16, #tpu.memory_space<vmem>>, vector<128x128xbf16>
    %c0_3 = arith.constant 0 : index
    %c0_4 = arith.constant 0 : index
    %2 = vector.load %arg3[%c0_3, %c0_4] : memref<1x128xf32, #tpu.memory_space<vmem>>, vector<1x128xf32>
    %c0_5 = arith.constant 0 : index
    %c0_6 = arith.constant 0 : index
    %3 = vector.load %arg4[%c0_5, %c0_6] : memref<128x128xbf16, #tpu.memory_space<vmem>>, vector<128x128xbf16>
    %c0_7 = arith.constant 0 : index
    %c0_8 = arith.constant 0 : index
    %4 = vector.load %arg5[%c0_7, %c0_8] : memref<1x128xf32, #tpu.memory_space<vmem>>, vector<1x128xf32>
    %c0_9 = arith.constant 0 : index
    %c0_10 = arith.constant 0 : index
    %5 = vector.load %arg6[%c0_9, %c0_10] : memref<128x128xbf16, #tpu.memory_space<vmem>>, vector<128x128xbf16>
    %c0_11 = arith.constant 0 : index
    %c0_12 = arith.constant 0 : index
    %6 = vector.load %arg7[%c0_11, %c0_12] : memref<1x128xf32, #tpu.memory_space<vmem>>, vector<1x128xf32>
    %7 = arith.truncf %0 : vector<16x128xf32> to vector<16x128xbf16>
    %cst = arith.constant dense<0.000000e+00> : vector<16x128xf32>
    %8 = tpu.matmul %7, %1, %cst {dimension_numbers = #tpu.dot_dimension_numbers<[1], [0], [0], [1], [0, 0, 1, 1], [], []>} : vector<16x128xbf16>, vector<128x128xbf16>, vector<16x128xf32> -> vector<16x128xf32>
    %9 = vector.broadcast %2 : vector<1x128xf32> to vector<16x128xf32>
    %10 = arith.addf %8, %9 : vector<16x128xf32>
    %cst_13 = arith.constant 0.000000e+00 : f32
    %11 = vector.broadcast %cst_13 : f32 to vector<16x128xf32>
    %12 = arith.maximumf %10, %11 : vector<16x128xf32>
    %13 = arith.truncf %12 : vector<16x128xf32> to vector<16x128xbf16>
    %cst_14 = arith.constant dense<0.000000e+00> : vector<16x128xf32>
    %14 = tpu.matmul %13, %3, %cst_14 {dimension_numbers = #tpu.dot_dimension_numbers<[1], [0], [0], [1], [0, 0, 1, 1], [], []>} : vector<16x128xbf16>, vector<128x128xbf16>, vector<16x128xf32> -> vector<16x128xf32>
    %15 = vector.broadcast %4 : vector<1x128xf32> to vector<16x128xf32>
    %16 = arith.addf %14, %15 : vector<16x128xf32>
    %cst_15 = arith.constant 0.000000e+00 : f32
    %17 = vector.broadcast %cst_15 : f32 to vector<16x128xf32>
    %18 = arith.maximumf %16, %17 : vector<16x128xf32>
    %19 = arith.truncf %18 : vector<16x128xf32> to vector<16x128xbf16>
    %cst_16 = arith.constant dense<0.000000e+00> : vector<16x128xf32>
    %20 = tpu.matmul %19, %5, %cst_16 {dimension_numbers = #tpu.dot_dimension_numbers<[1], [0], [0], [1], [0, 0, 1, 1], [], []>} : vector<16x128xbf16>, vector<128x128xbf16>, vector<16x128xf32> -> vector<16x128xf32>
    %21 = vector.broadcast %6 : vector<1x128xf32> to vector<16x128xf32>
    %22 = arith.addf %20, %21 : vector<16x128xf32>
    %23 = tpu.iota {dimensions = array<i32: 1>} : vector<16x128xi32>
    %c32_i32 = arith.constant 32 : i32
    %24 = vector.broadcast %c32_i32 : i32 to vector<16x128xi32>
    %25 = arith.cmpi slt, %23, %24 : vector<16x128xi32>
    %cst_17 = arith.constant 0.000000e+00 : f32
    %26 = vector.broadcast %cst_17 : f32 to vector<16x128xf32>
    %27 = arith.select %25, %0, %26 : vector<16x128xi1>, vector<16x128xf32>
    %28 = arith.addf %27, %22 : vector<16x128xf32>
    %c0_18 = arith.constant 0 : index
    %c0_19 = arith.constant 0 : index
    %29 = vector.load %arg8[%c0_18, %c0_19] : memref<16x128xf32, #tpu.memory_space<vmem>>, vector<16x128xf32>
    tpu.vector_store %arg8[%c0_18, %c0_19], %28 {strides = array<i32>} : memref<16x128xf32, #tpu.memory_space<vmem>>, vector<16x128xf32>,
    return
  }
  func.func @transform_0(%arg0: i32) -> (i32, i32) {
    %c0_i32 = arith.constant 0 : i32
    %c0_i32_0 = arith.constant 0 : i32
    return %arg0, %c0_i32 : i32, i32
  }
  func.func @transform_1(%arg0: i32) -> (i32, i32) {
    %c0_i32 = arith.constant 0 : i32
    %c0_i32_0 = arith.constant 0 : i32
    %c0_i32_1 = arith.constant 0 : i32
    return %c0_i32, %c0_i32_0 : i32, i32
  }
  func.func @transform_2(%arg0: i32) -> (i32, i32) {
    %c0_i32 = arith.constant 0 : i32
    %c0_i32_0 = arith.constant 0 : i32
    %c0_i32_1 = arith.constant 0 : i32
    return %c0_i32, %c0_i32_0 : i32, i32
  }
  func.func @transform_3(%arg0: i32) -> (i32, i32) {
    %c0_i32 = arith.constant 0 : i32
    %c0_i32_0 = arith.constant 0 : i32
    %c0_i32_1 = arith.constant 0 : i32
    return %c0_i32, %c0_i32_0 : i32, i32
  }
  func.func @transform_4(%arg0: i32) -> (i32, i32) {
    %c0_i32 = arith.constant 0 : i32
    %c0_i32_0 = arith.constant 0 : i32
    %c0_i32_1 = arith.constant 0 : i32
    return %c0_i32, %c0_i32_0 : i32, i32
  }
  func.func @transform_5(%arg0: i32) -> (i32, i32) {
    %c0_i32 = arith.constant 0 : i32
    %c0_i32_0 = arith.constant 0 : i32
    %c0_i32_1 = arith.constant 0 : i32
    return %c0_i32, %c0_i32_0 : i32, i32
  }
  func.func @transform_6(%arg0: i32) -> (i32, i32) {
    %c0_i32 = arith.constant 0 : i32
    %c0_i32_0 = arith.constant 0 : i32
    %c0_i32_1 = arith.constant 0 : i32
    return %c0_i32, %c0_i32_0 : i32, i32
  }
  func.func @transform_7(%arg0: i32) -> (i32, i32) {
    %c0_i32 = arith.constant 0 : i32
    %c0_i32_0 = arith.constant 0 : i32
    return %arg0, %c0_i32 : i32, i32
  }
}

module attributes {stable_mosaic.version = 11 : i64} {
  func.func @_oib_kernel(%arg0: i32, %arg1: memref<104x128xf32, #tpu.memory_space<vmem>>, %arg2: memref<104x128xf32, #tpu.memory_space<vmem>>, %arg3: memref<128x128xbf16, #tpu.memory_space<vmem>>, %arg4: memref<1x128xf32, #tpu.memory_space<vmem>>, %arg5: memref<128x128xbf16, #tpu.memory_space<vmem>>, %arg6: memref<1x128xf32, #tpu.memory_space<vmem>>, %arg7: memref<128x128xbf16, #tpu.memory_space<vmem>>, %arg8: memref<1x128xf32, #tpu.memory_space<vmem>>, %arg9: memref<104x128xf32, #tpu.memory_space<vmem>>) attributes {dimension_semantics = [#tpu.dimension_semantics<parallel>], iteration_bounds = array<i64: 1>, scalar_prefetch = 0 : i64, scratch_operands = 0 : i64, tpu.core_type = #tpu.core_type<tc>, window_params = [{transform_indices = @transform_0, window_bounds = array<i64: 104, 128>}, {transform_indices = @transform_1, window_bounds = array<i64: 104, 128>}, {pipeline_mode = #tpu.pipeline_mode<synchronous>, transform_indices = @transform_2, window_bounds = array<i64: 128, 128>}, {pipeline_mode = #tpu.pipeline_mode<synchronous>, transform_indices = @transform_3, window_bounds = array<i64: 1, 128>}, {pipeline_mode = #tpu.pipeline_mode<synchronous>, transform_indices = @transform_4, window_bounds = array<i64: 128, 128>}, {pipeline_mode = #tpu.pipeline_mode<synchronous>, transform_indices = @transform_5, window_bounds = array<i64: 1, 128>}, {pipeline_mode = #tpu.pipeline_mode<synchronous>, transform_indices = @transform_6, window_bounds = array<i64: 128, 128>}, {pipeline_mode = #tpu.pipeline_mode<synchronous>, transform_indices = @transform_7, window_bounds = array<i64: 1, 128>}, {transform_indices = @transform_8, window_bounds = array<i64: 104, 128>}]} {
    %c0 = arith.constant 0 : index
    %c0_0 = arith.constant 0 : index
    %0 = vector.load %arg1[%c0, %c0_0] : memref<104x128xf32, #tpu.memory_space<vmem>>, vector<104x128xf32>
    %c0_1 = arith.constant 0 : index
    %c0_2 = arith.constant 0 : index
    %1 = vector.load %arg3[%c0_1, %c0_2] : memref<128x128xbf16, #tpu.memory_space<vmem>>, vector<128x128xbf16>
    %c0_3 = arith.constant 0 : index
    %c0_4 = arith.constant 0 : index
    %2 = vector.load %arg4[%c0_3, %c0_4] : memref<1x128xf32, #tpu.memory_space<vmem>>, vector<1x128xf32>
    %c0_5 = arith.constant 0 : index
    %c0_6 = arith.constant 0 : index
    %3 = vector.load %arg5[%c0_5, %c0_6] : memref<128x128xbf16, #tpu.memory_space<vmem>>, vector<128x128xbf16>
    %c0_7 = arith.constant 0 : index
    %c0_8 = arith.constant 0 : index
    %4 = vector.load %arg6[%c0_7, %c0_8] : memref<1x128xf32, #tpu.memory_space<vmem>>, vector<1x128xf32>
    %c0_9 = arith.constant 0 : index
    %c0_10 = arith.constant 0 : index
    %5 = vector.load %arg7[%c0_9, %c0_10] : memref<128x128xbf16, #tpu.memory_space<vmem>>, vector<128x128xbf16>
    %c0_11 = arith.constant 0 : index
    %c0_12 = arith.constant 0 : index
    %6 = vector.load %arg8[%c0_11, %c0_12] : memref<1x128xf32, #tpu.memory_space<vmem>>, vector<1x128xf32>
    %7 = arith.truncf %0 : vector<104x128xf32> to vector<104x128xbf16>
    %cst = arith.constant dense<0.000000e+00> : vector<104x128xf32>
    %8 = tpu.matmul %7, %1, %cst {dimension_numbers = #tpu.dot_dimension_numbers<[1], [0], [0], [1], [0, 0, 1, 1], [], []>} : vector<104x128xbf16>, vector<128x128xbf16>, vector<104x128xf32> -> vector<104x128xf32>
    %9 = vector.broadcast %2 : vector<1x128xf32> to vector<104x128xf32>
    %10 = arith.addf %8, %9 : vector<104x128xf32>
    %cst_13 = arith.constant 0.000000e+00 : f32
    %11 = vector.broadcast %cst_13 : f32 to vector<104x128xf32>
    %12 = arith.maximumf %10, %11 : vector<104x128xf32>
    %13 = arith.truncf %12 : vector<104x128xf32> to vector<104x128xbf16>
    %cst_14 = arith.constant dense<0.000000e+00> : vector<104x128xf32>
    %14 = tpu.matmul %13, %3, %cst_14 {dimension_numbers = #tpu.dot_dimension_numbers<[1], [0], [0], [1], [0, 0, 1, 1], [], []>} : vector<104x128xbf16>, vector<128x128xbf16>, vector<104x128xf32> -> vector<104x128xf32>
    %15 = vector.broadcast %4 : vector<1x128xf32> to vector<104x128xf32>
    %16 = arith.addf %14, %15 : vector<104x128xf32>
    %cst_15 = arith.constant 0.000000e+00 : f32
    %17 = vector.broadcast %cst_15 : f32 to vector<104x128xf32>
    %18 = arith.maximumf %16, %17 : vector<104x128xf32>
    %19 = arith.truncf %18 : vector<104x128xf32> to vector<104x128xbf16>
    %cst_16 = arith.constant dense<0.000000e+00> : vector<104x128xf32>
    %20 = tpu.matmul %19, %5, %cst_16 {dimension_numbers = #tpu.dot_dimension_numbers<[1], [0], [0], [1], [0, 0, 1, 1], [], []>} : vector<104x128xbf16>, vector<128x128xbf16>, vector<104x128xf32> -> vector<104x128xf32>
    %21 = vector.broadcast %6 : vector<1x128xf32> to vector<104x128xf32>
    %22 = arith.addf %20, %21 : vector<104x128xf32>
    %c0_17 = arith.constant 0 : index
    %c0_18 = arith.constant 0 : index
    %23 = vector.load %arg2[%c0_17, %c0_18] : memref<104x128xf32, #tpu.memory_space<vmem>>, vector<104x128xf32>
    %24 = arith.addf %23, %22 : vector<104x128xf32>
    %c0_19 = arith.constant 0 : index
    %c0_20 = arith.constant 0 : index
    %25 = vector.load %arg9[%c0_19, %c0_20] : memref<104x128xf32, #tpu.memory_space<vmem>>, vector<104x128xf32>
    tpu.vector_store %arg9[%c0_19, %c0_20], %24 {strides = array<i32>} : memref<104x128xf32, #tpu.memory_space<vmem>>, vector<104x128xf32>,
    return
  }
  func.func @transform_0(%arg0: i32) -> (i32, i32) {
    %c0_i32 = arith.constant 0 : i32
    %c0_i32_0 = arith.constant 0 : i32
    return %arg0, %c0_i32 : i32, i32
  }
  func.func @transform_1(%arg0: i32) -> (i32, i32) {
    %c0_i32 = arith.constant 0 : i32
    %c0_i32_0 = arith.constant 0 : i32
    return %arg0, %c0_i32 : i32, i32
  }
  func.func @transform_2(%arg0: i32) -> (i32, i32) {
    %c0_i32 = arith.constant 0 : i32
    %c0_i32_0 = arith.constant 0 : i32
    %c0_i32_1 = arith.constant 0 : i32
    return %c0_i32, %c0_i32_0 : i32, i32
  }
  func.func @transform_3(%arg0: i32) -> (i32, i32) {
    %c0_i32 = arith.constant 0 : i32
    %c0_i32_0 = arith.constant 0 : i32
    %c0_i32_1 = arith.constant 0 : i32
    return %c0_i32, %c0_i32_0 : i32, i32
  }
  func.func @transform_4(%arg0: i32) -> (i32, i32) {
    %c0_i32 = arith.constant 0 : i32
    %c0_i32_0 = arith.constant 0 : i32
    %c0_i32_1 = arith.constant 0 : i32
    return %c0_i32, %c0_i32_0 : i32, i32
  }
  func.func @transform_5(%arg0: i32) -> (i32, i32) {
    %c0_i32 = arith.constant 0 : i32
    %c0_i32_0 = arith.constant 0 : i32
    %c0_i32_1 = arith.constant 0 : i32
    return %c0_i32, %c0_i32_0 : i32, i32
  }
  func.func @transform_6(%arg0: i32) -> (i32, i32) {
    %c0_i32 = arith.constant 0 : i32
    %c0_i32_0 = arith.constant 0 : i32
    %c0_i32_1 = arith.constant 0 : i32
    return %c0_i32, %c0_i32_0 : i32, i32
  }
  func.func @transform_7(%arg0: i32) -> (i32, i32) {
    %c0_i32 = arith.constant 0 : i32
    %c0_i32_0 = arith.constant 0 : i32
    %c0_i32_1 = arith.constant 0 : i32
    return %c0_i32, %c0_i32_0 : i32, i32
  }
  func.func @transform_8(%arg0: i32) -> (i32, i32) {
    %c0_i32 = arith.constant 0 : i32
    %c0_i32_0 = arith.constant 0 : i32
    return %arg0, %c0_i32 : i32, i32
  }
}

</mosaic_0001>

<llo_original>
// kernel: custom-call.4
$region0: #{custom-call.4}
  %s0 = inlined_call_operand.vmem [shape: s32[8,100], index: 0, kind: output, shape index: {}]

// kernel: custom-call.5
$region0: #{custom-call.5}
  %s0 = inlined_call_operand.vmem [shape: f32[8,100,8], index: 0, kind: output, shape index: {}]

// kernel: adapted_x_forward.1
$region0: #{adapted_x_forward.1}
  #allocation0 [shape = 'u32[]', space=smem, size = 0x4, offset = 0x4, fixed_abs, tag = 'smem constant byte address 0x4 - core index']
  #allocation1 [shape = 'u32[72,128]{1,0:T(1,128)}', space=vmem, size = 0x9000, scoped, tag = 'internal scratch']
  %s0 = inlined_call_operand.vmem [shape: f32[16,128], index: 0, kind: input, shape index: {}]
  %s1 = inlined_call_operand.vmem [shape: bf16[128,128], index: 1, kind: input, shape index: {}]
  %s2 = inlined_call_operand.vmem [shape: f32[1,128], index: 2, kind: input, shape index: {}]
  %s3 = inlined_call_operand.hbm [shape: bf16[128,128], index: 3, kind: input, shape index: {}]
  %s4 = inlined_call_operand.vmem [shape: f32[1,128], index: 4, kind: input, shape index: {}]
  %s5 = inlined_call_operand.hbm [shape: bf16[128,128], index: 5, kind: input, shape index: {}]
  %s6 = inlined_call_operand.vmem [shape: f32[1,128], index: 6, kind: input, shape index: {}]
  %s7 = inlined_call_operand.vmem [shape: f32[16,128], index: 7, kind: output, shape index: {}]
  %s8 = sld [smem:[#allocation0]]
  $region46: #{adapted_x_forward.1} parent=0
    _
  %s10 = ssub.s32 1, %s8
  %s11 = scalar_select 0, %s10, %s8
  $region1: #{adapted_x_forward.1} parent=0
    #allocation2 [shape = 'u8[32768]{0}', space=vmem, size = 0x8000, scoped, tag = 'input window, operand 3, single buffered']
    #allocation3 [shape = 's32[1]{0}', space=sflag, size = 0x4, scoped, tag = 'scoped memory for adapted_x_forward.1']
    #allocation4 [shape = 'u8[32768]{0}', space=vmem, size = 0x8000, scoped, tag = 'input window, operand 5, single buffered']
    #allocation5 [shape = 's32[1]{0}', space=sflag, size = 0x4, scoped, tag = 'scoped memory for adapted_x_forward.1']
    %12 = vsyncpa [#allocation3], 0
    %13 = vsyncpa [#allocation5], 0
    // Predicated region
    $region2: #{adapted_x_forward.1} parent=1 // pred_check
      _
    $region3: #{adapted_x_forward.1} parent=1 // pred_check_branch
      %15 = sbr.rel (0) target = $region5
    $region4: #{adapted_x_forward.1} parent=1 // pred_region
      _
    $region5: #{adapted_x_forward.1} parent=1 // pred_fallthru
      _
    // Predicated region
    $region6: #{adapted_x_forward.1} parent=1 // pred_check
      _
    $region7: #{adapted_x_forward.1} parent=1 // pred_check_branch
      %17 = sbr.rel (0) target = $region9
    $region8: #{adapted_x_forward.1} parent=1 // pred_region
      _
    $region9: #{adapted_x_forward.1} parent=1 // pred_fallthru
      _
    // Predicated region
    $region10: #{adapted_x_forward.1} parent=1 // pred_check
      _
    $region11: #{adapted_x_forward.1} parent=1 // pred_check_branch
      %19 = sbr.rel (0) target = $region13
    $region12: #{adapted_x_forward.1} parent=1 // pred_region
      _
    $region13: #{adapted_x_forward.1} parent=1 // pred_fallthru
      _
    // Predicated region
    $region14: #{adapted_x_forward.1} parent=1 // pred_check
      _
    $region15: #{adapted_x_forward.1} parent=1 // pred_check_branch
      %21 = sbr.rel (0) target = $region17
    $region16: #{adapted_x_forward.1} parent=1 // pred_region
      %23 = vsyncadd [#allocation3], 0
      %s24 = sshll.u32 %s3, 4
      %s25 = int_to_ptr.hbm [resolvable:$true] %s24
      %s26 = sshll.u32 [#allocation2], 4
      %s27 = int_to_ptr.vmem [resolvable:$true] %s26
      %32 = dma.hbm_to_vmem [thread:$0]  %s25, 1024, %s27, [#allocation3], 64, 64, 4
    $region17: #{adapted_x_forward.1} parent=1 // pred_fallthru
      _
    // Predicated region
    $region18: #{adapted_x_forward.1} parent=1 // pred_check
      _
    $region19: #{adapted_x_forward.1} parent=1 // pred_check_branch
      %34 = sbr.rel (0) target = $region21
    $region20: #{adapted_x_forward.1} parent=1 // pred_region
      _
    $region21: #{adapted_x_forward.1} parent=1 // pred_fallthru
      _
    // Predicated region
    $region22: #{adapted_x_forward.1} parent=1 // pred_check
      _
    $region23: #{adapted_x_forward.1} parent=1 // pred_check_branch
      %36 = sbr.rel (0) target = $region25
    $region24: #{adapted_x_forward.1} parent=1 // pred_region
      %38 = vsyncadd [#allocation5], 0
      %s39 = sshll.u32 %s5, 4
      %s40 = int_to_ptr.hbm [resolvable:$true] %s39
      %s41 = sshll.u32 [#allocation4], 4
      %s42 = int_to_ptr.vmem [resolvable:$true] %s41
      %47 = dma.hbm_to_vmem [thread:$0]  %s40, 1024, %s42, [#allocation5], 64, 64, 4
    $region25: #{adapted_x_forward.1} parent=1 // pred_fallthru
      _
    // Predicated region
    $region26: #{adapted_x_forward.1} parent=1 // pred_check
      _
    $region27: #{adapted_x_forward.1} parent=1 // pred_check_branch
      %49 = sbr.rel (0) target = $region29
    $region28: #{adapted_x_forward.1} parent=1 // pred_region
      _
    $region29: #{adapted_x_forward.1} parent=1 // pred_fallthru
      _
    // Predicated region
    $region30: #{adapted_x_forward.1} parent=1 // pred_check
      _
    $region31: #{adapted_x_forward.1} parent=1 // pred_check_branch
      %51 = sbr.rel (0) target = $region33
    $region32: #{adapted_x_forward.1} parent=1 // pred_region
      %53 = dma.done [#allocation3], 1024
    $region33: #{adapted_x_forward.1} parent=1 // pred_fallthru
      _
    // Predicated region
    $region34: #{adapted_x_forward.1} parent=1 // pred_check
      _
    $region35: #{adapted_x_forward.1} parent=1 // pred_check_branch
      %55 = sbr.rel (0) target = $region37
    $region36: #{adapted_x_forward.1} parent=1 // pred_region
      %57 = dma.done [#allocation5], 1024
    $region37: #{adapted_x_forward.1} parent=1 // pred_fallthru
      _
    %v58 = vld [vmem:[%s0] sm:$0xff]
    %v59 = vld [vmem:[%s0 + $0x8] sm:$0xff]
    %v60 = vld [vmem:[%s1] sm:$0xf]
    %v61 = vld [vmem:[%s1 + $0x4] sm:$0xf]
    %v62 = vld [vmem:[%s1 + $0x8] sm:$0xf]
    %v63 = vld [vmem:[%s1 + $0xc] sm:$0xf]
    %v64 = vld [vmem:[%s1 + $0x10] sm:$0xf]
    %v65 = vld [vmem:[%s1 + $0x14] sm:$0xf]
    %v66 = vld [vmem:[%s1 + $0x18] sm:$0xf]
    %v67 = vld [vmem:[%s1 + $0x1c] sm:$0xf]
    %v68 = vld [vmem:[%s1 + $0x20] sm:$0xf]
    %v69 = vld [vmem:[%s1 + $0x24] sm:$0xf]
    %v70 = vld [vmem:[%s1 + $0x28] sm:$0xf]
    %v71 = vld [vmem:[%s1 + $0x2c] sm:$0xf]
    %v72 = vld [vmem:[%s1 + $0x30] sm:$0xf]
    %v73 = vld [vmem:[%s1 + $0x34] sm:$0xf]
    %v74 = vld [vmem:[%s1 + $0x38] sm:$0xf]
    %v75 = vld [vmem:[%s1 + $0x3c] sm:$0xf]
    %v76 = vld [vmem:[%s2] sm:$0x1]
    %v77 = vld [vmem:[#allocation2] sm:$0xf]
    %v78 = vld [vmem:[#allocation2 + $0x4] sm:$0xf]
    %v79 = vld [vmem:[#allocation2 + $0x8] sm:$0xf]
    %v80 = vld [vmem:[#allocation2 + $0xc] sm:$0xf]
    %v81 = vld [vmem:[#allocation2 + $0x10] sm:$0xf]
    %v82 = vld [vmem:[#allocation2 + $0x14] sm:$0xf]
    %v83 = vld [vmem:[#allocation2 + $0x18] sm:$0xf]
    %v84 = vld [vmem:[#allocation2 + $0x1c] sm:$0xf]
    %v85 = vld [vmem:[#allocation2 + $0x20] sm:$0xf]
    %v86 = vld [vmem:[#allocation2 + $0x24] sm:$0xf]
    %v87 = vld [vmem:[#allocation2 + $0x28] sm:$0xf]
    %v88 = vld [vmem:[#allocation2 + $0x2c] sm:$0xf]
    %v89 = vld [vmem:[#allocation2 + $0x30] sm:$0xf]
    %v90 = vld [vmem:[#allocation2 + $0x34] sm:$0xf]
    %v91 = vld [vmem:[#allocation2 + $0x38] sm:$0xf]
    %v92 = vld [vmem:[#allocation2 + $0x3c] sm:$0xf]
    %v93 = vld [vmem:[%s4] sm:$0x1]
    %v94 = vld [vmem:[#allocation4] sm:$0xf]
    %v95 = vld [vmem:[#allocation4 + $0x4] sm:$0xf]
    %v96 = vld [vmem:[#allocation4 + $0x8] sm:$0xf]
    %v97 = vld [vmem:[#allocation4 + $0xc] sm:$0xf]
    %v98 = vld [vmem:[#allocation4 + $0x10] sm:$0xf]
    %v99 = vld [vmem:[#allocation4 + $0x14] sm:$0xf]
    %v100 = vld [vmem:[#allocation4 + $0x18] sm:$0xf]
    %v101 = vld [vmem:[#allocation4 + $0x1c] sm:$0xf]
    %v102 = vld [vmem:[#allocation4 + $0x20] sm:$0xf]
    %v103 = vld [vmem:[#allocation4 + $0x24] sm:$0xf]
    %v104 = vld [vmem:[#allocation4 + $0x28] sm:$0xf]
    %v105 = vld [vmem:[#allocation4 + $0x2c] sm:$0xf]
    %v106 = vld [vmem:[#allocation4 + $0x30] sm:$0xf]
    %v107 = vld [vmem:[#allocation4 + $0x34] sm:$0xf]
    %v108 = vld [vmem:[#allocation4 + $0x38] sm:$0xf]
    %v109 = vld [vmem:[#allocation4 + $0x3c] sm:$0xf]
    %v110 = vld [vmem:[%s6] sm:$0x1]
    %v111 = vpack.c.bf16 %v59, %v58
    %v113 = vperm.slane %v76, 0
    %v131 = vunpack.c.l.b16 %v60
    %v132 = vunpack.c.l.b16 %v61
    %v133 = vunpack.c.l.b16 %v62
    %v134 = vunpack.c.l.b16 %v63
    %v135 = vunpack.c.l.b16 %v64
    %v136 = vunpack.c.l.b16 %v65
    %v137 = vunpack.c.l.b16 %v66
    %v138 = vunpack.c.l.b16 %v67
    %v139 = vunpack.c.l.b16 %v68
    %v140 = vunpack.c.l.b16 %v69
    %v141 = vunpack.c.l.b16 %v70
    %v142 = vunpack.c.l.b16 %v71
    %v143 = vunpack.c.l.b16 %v72
    %v144 = vunpack.c.l.b16 %v73
    %v145 = vunpack.c.l.b16 %v74
    %v146 = vunpack.c.l.b16 %v75
    %v147 = vpack.c.b16 %v132, %v131
    %v148 = vpack.c.b16 %v134, %v133
    %v149 = vpack.c.b16 %v136, %v135
    %v150 = vpack.c.b16 %v138, %v137
    %v151 = vpack.c.b16 %v140, %v139
    %v152 = vpack.c.b16 %v142, %v141
    %v153 = vpack.c.b16 %v144, %v143
    %v154 = vpack.c.b16 %v146, %v145
    %163 = vmatpush.bf16.msra.mxu0 %v154
    %164 = vmatpush.bf16.msra.mxu0 %v153
    %165 = vmatpush.bf16.msra.mxu0 %v152
    %166 = vmatpush.bf16.msra.mxu0 %v151
    %167 = vmatpush.bf16.msra.mxu0 %v150
    %168 = vmatpush.bf16.msra.mxu0 %v149
    %169 = vmatpush.bf16.msra.mxu0 %v148
    %170 = vmatpush.bf16.msra.mxu0 %v147
    %171 = vmatmul.bf16.gmra.mxu0 %v111
    %v172 = vpop.f32.mrf.mxu0
    %v173 = vadd.f32 %v113, %v172
    %v174 = vpop.f32.mrf.mxu0
    %v175 = vadd.f32 %v113, %v174
    %176 = vdwg.mxu0
    %v177 = vmax.f32 %v173, 0.0
    %v178 = vmax.f32 %v175, 0.0
    %v179 = vpack.c.bf16 %v178, %v177
    %v181 = vperm.slane %v93, 0
    %v199 = vunpack.c.l.b16 %v77
    %v200 = vunpack.c.l.b16 %v78
    %v201 = vunpack.c.l.b16 %v79
    %v202 = vunpack.c.l.b16 %v80
    %v203 = vunpack.c.l.b16 %v81
    %v204 = vunpack.c.l.b16 %v82
    %v205 = vunpack.c.l.b16 %v83
    %v206 = vunpack.c.l.b16 %v84
    %v207 = vunpack.c.l.b16 %v85
    %v208 = vunpack.c.l.b16 %v86
    %v209 = vunpack.c.l.b16 %v87
    %v210 = vunpack.c.l.b16 %v88
    %v211 = vunpack.c.l.b16 %v89
    %v212 = vunpack.c.l.b16 %v90
    %v213 = vunpack.c.l.b16 %v91
    %v214 = vunpack.c.l.b16 %v92
    %v215 = vpack.c.b16 %v200, %v199
    %v216 = vpack.c.b16 %v202, %v201
    %v217 = vpack.c.b16 %v204, %v203
    %v218 = vpack.c.b16 %v206, %v205
    %v219 = vpack.c.b16 %v208, %v207
    %v220 = vpack.c.b16 %v210, %v209
    %v221 = vpack.c.b16 %v212, %v211
    %v222 = vpack.c.b16 %v214, %v213
    %231 = vmatpush.bf16.msra.mxu0 %v222
    %232 = vmatpush.bf16.msra.mxu0 %v221
    %233 = vmatpush.bf16.msra.mxu0 %v220
    %234 = vmatpush.bf16.msra.mxu0 %v219
    %235 = vmatpush.bf16.msra.mxu0 %v218
    %236 = vmatpush.bf16.msra.mxu0 %v217
    %237 = vmatpush.bf16.msra.mxu0 %v216
    %238 = vmatpush.bf16.msra.mxu0 %v215
    %239 = vmatmul.bf16.gmra.mxu0 %v179
    %v240 = vpop.f32.mrf.mxu0
    %v241 = vadd.f32 %v181, %v240
    %v242 = vpop.f32.mrf.mxu0
    %v243 = vadd.f32 %v181, %v242
    %244 = vdwg.mxu0
    %v245 = vmax.f32 %v241, 0.0
    %v246 = vmax.f32 %v243, 0.0
    %v247 = vpack.c.bf16 %v246, %v245
    %v249 = vperm.slane %v110, 0
    %v267 = vunpack.c.l.b16 %v94
    %v268 = vunpack.c.l.b16 %v95
    %v269 = vunpack.c.l.b16 %v96
    %v270 = vunpack.c.l.b16 %v97
    %v271 = vunpack.c.l.b16 %v98
    %v272 = vunpack.c.l.b16 %v99
    %v273 = vunpack.c.l.b16 %v100
    %v274 = vunpack.c.l.b16 %v101
    %v275 = vunpack.c.l.b16 %v102
    %v276 = vunpack.c.l.b16 %v103
    %v277 = vunpack.c.l.b16 %v104
    %v278 = vunpack.c.l.b16 %v105
    %v279 = vunpack.c.l.b16 %v106
    %v280 = vunpack.c.l.b16 %v107
    %v281 = vunpack.c.l.b16 %v108
    %v282 = vunpack.c.l.b16 %v109
    %v283 = vpack.c.b16 %v268, %v267
    %v284 = vpack.c.b16 %v270, %v269
    %v285 = vpack.c.b16 %v272, %v271
    %v286 = vpack.c.b16 %v274, %v273
    %v287 = vpack.c.b16 %v276, %v275
    %v288 = vpack.c.b16 %v278, %v277
    %v289 = vpack.c.b16 %v280, %v279
    %v290 = vpack.c.b16 %v282, %v281
    %299 = vmatpush.bf16.msra.mxu0 %v290
    %300 = vmatpush.bf16.msra.mxu0 %v289
    %301 = vmatpush.bf16.msra.mxu0 %v288
    %302 = vmatpush.bf16.msra.mxu0 %v287
    %303 = vmatpush.bf16.msra.mxu0 %v286
    %304 = vmatpush.bf16.msra.mxu0 %v285
    %305 = vmatpush.bf16.msra.mxu0 %v284
    %306 = vmatpush.bf16.msra.mxu0 %v283
    %307 = vmatmul.bf16.gmra.mxu0 %v247
    %v308 = vpop.f32.mrf.mxu0
    %v309 = vadd.f32 %v249, %v308
    %v310 = vpop.f32.mrf.mxu0
    %v311 = vadd.f32 %v249, %v310
    %312 = vdwg.mxu0
    %v313 = vlaneseq
    %v314 = vand.u32 %v313, 127
    %vm315 = vcmp.lt.s32.totalorder %v314, 32
    %v316 = vsel %vm315, %v58, 0.0
    %v317 = vsel %vm315, %v59, 0.0
    %v318 = vadd.f32 %v316, %v309
    %v319 = vadd.f32 %v317, %v311
    %320 = vst [vmem:[%s7] sm:$0xff] %v318
    %321 = vst [vmem:[%s7 + $0x8] sm:$0xff] %v319
    // Predicated region
    $region38: #{adapted_x_forward.1} parent=1 // pred_check
      _
    $region39: #{adapted_x_forward.1} parent=1 // pred_check_branch
      %323 = sbr.rel (0) target = $region41
    $region40: #{adapted_x_forward.1} parent=1 // pred_region
      _
    $region41: #{adapted_x_forward.1} parent=1 // pred_fallthru
      _
    // Predicated region
    $region42: #{adapted_x_forward.1} parent=1 // pred_check
      _
    $region43: #{adapted_x_forward.1} parent=1 // pred_check_branch
      %325 = sbr.rel (0) target = $region45
    $region44: #{adapted_x_forward.1} parent=1 // pred_region
      _
    $region45: #{adapted_x_forward.1} parent=1 // pred_fallthru
      _
    %326 = vsyncpa [#allocation3], 1
    %327 = vsyncpa [#allocation5], 1

// kernel: closed_call.25
$region0: #{closed_call.25}
  #allocation0 [shape = 'u32[]', space=smem, size = 0x4, offset = 0x4, fixed_abs, tag = 'smem constant byte address 0x4 - core index']
  #allocation1 [shape = 'u32[72,128]{1,0:T(1,128)}', space=vmem, size = 0x9000, scoped, tag = 'internal scratch']
  %s0 = inlined_call_operand.vmem [shape: f32[104,128], index: 0, kind: input, shape index: {}]
  %s1 = inlined_call_operand.vmem [shape: f32[104,128], index: 1, kind: input, shape index: {}]
  %s2 = inlined_call_operand.vmem [shape: bf16[128,128], index: 2, kind: input, shape index: {}]
  %s3 = inlined_call_operand.vmem [shape: f32[1,128], index: 3, kind: input, shape index: {}]
  %s4 = inlined_call_operand.vmem [shape: bf16[128,128], index: 4, kind: input, shape index: {}]
  %s5 = inlined_call_operand.vmem [shape: f32[1,128], index: 5, kind: input, shape index: {}]
  %s6 = inlined_call_operand.vmem [shape: bf16[128,128], index: 6, kind: input, shape index: {}]
  %s7 = inlined_call_operand.vmem [shape: f32[1,128], index: 7, kind: input, shape index: {}]
  %s8 = inlined_call_operand.vmem [shape: f32[104,128], index: 8, kind: output, shape index: {}]
  %s9 = sld [smem:[#allocation0]]
  $region42: #{closed_call.25} parent=0
    _
  %s11 = ssub.s32 1, %s9
  %s12 = scalar_select 0, %s11, %s9
  // Predicated region
  $region2: #{closed_call.25} parent=0 // pred_check
    _
  $region3: #{closed_call.25} parent=0 // pred_check_branch
    %14 = sbr.rel (0) target = $region5
  $region4: #{closed_call.25} parent=0 // pred_region
    _
  $region5: #{closed_call.25} parent=0 // pred_fallthru
    _
  // Predicated region
  $region6: #{closed_call.25} parent=0 // pred_check
    _
  $region7: #{closed_call.25} parent=0 // pred_check_branch
    %16 = sbr.rel (0) target = $region9
  $region8: #{closed_call.25} parent=0 // pred_region
    _
  $region9: #{closed_call.25} parent=0 // pred_fallthru
    _
  // Predicated region
  $region10: #{closed_call.25} parent=0 // pred_check
    _
  $region11: #{closed_call.25} parent=0 // pred_check_branch
    %18 = sbr.rel (0) target = $region13
  $region12: #{closed_call.25} parent=0 // pred_region
    _
  $region13: #{closed_call.25} parent=0 // pred_fallthru
    _
  // Predicated region
  $region14: #{closed_call.25} parent=0 // pred_check
    _
  $region15: #{closed_call.25} parent=0 // pred_check_branch
    %20 = sbr.rel (0) target = $region17
  $region16: #{closed_call.25} parent=0 // pred_region
    _
  $region17: #{closed_call.25} parent=0 // pred_fallthru
    _
  // Predicated region
  $region18: #{closed_call.25} parent=0 // pred_check
    _
  $region19: #{closed_call.25} parent=0 // pred_check_branch
    %22 = sbr.rel (0) target = $region21
  $region20: #{closed_call.25} parent=0 // pred_region
    _
  $region21: #{closed_call.25} parent=0 // pred_fallthru
    _
  // Predicated region
  $region22: #{closed_call.25} parent=0 // pred_check
    _
  $region23: #{closed_call.25} parent=0 // pred_check_branch
    %24 = sbr.rel (0) target = $region25
  $region24: #{closed_call.25} parent=0 // pred_region
    _
  $region25: #{closed_call.25} parent=0 // pred_fallthru
    _
  // Predicated region
  $region26: #{closed_call.25} parent=0 // pred_check
    _
  $region27: #{closed_call.25} parent=0 // pred_check_branch
    %26 = sbr.rel (0) target = $region29
  $region28: #{closed_call.25} parent=0 // pred_region
    _
  $region29: #{closed_call.25} parent=0 // pred_fallthru
    _
  // Predicated region
  $region30: #{closed_call.25} parent=0 // pred_check
    _
  $region31: #{closed_call.25} parent=0 // pred_check_branch
    %28 = sbr.rel (0) target = $region33
  $region32: #{closed_call.25} parent=0 // pred_region
    _
  $region33: #{closed_call.25} parent=0 // pred_fallthru
    _
  %v29 = vld [vmem:[%s0] sm:$0xff]
  %v30 = vld [vmem:[%s0 + $0x8] sm:$0xff]
  %v31 = vld [vmem:[%s0 + $0x10] sm:$0xff]
  %v32 = vld [vmem:[%s0 + $0x18] sm:$0xff]
  %v33 = vld [vmem:[%s0 + $0x20] sm:$0xff]
  %v34 = vld [vmem:[%s0 + $0x28] sm:$0xff]
  %v35 = vld [vmem:[%s0 + $0x30] sm:$0xff]
  %v36 = vld [vmem:[%s0 + $0x38] sm:$0xff]
  %v37 = vld [vmem:[%s0 + $0x40] sm:$0xff]
  %v38 = vld [vmem:[%s0 + $0x48] sm:$0xff]
  %v39 = vld [vmem:[%s0 + $0x50] sm:$0xff]
  %v40 = vld [vmem:[%s0 + $0x58] sm:$0xff]
  %v41 = vld [vmem:[%s0 + $0x60] sm:$0xff]
  %v42 = vld [vmem:[%s2] sm:$0xf]
  %v43 = vld [vmem:[%s2 + $0x4] sm:$0xf]
  %v44 = vld [vmem:[%s2 + $0x8] sm:$0xf]
  %v45 = vld [vmem:[%s2 + $0xc] sm:$0xf]
  %v46 = vld [vmem:[%s2 + $0x10] sm:$0xf]
  %v47 = vld [vmem:[%s2 + $0x14] sm:$0xf]
  %v48 = vld [vmem:[%s2 + $0x18] sm:$0xf]
  %v49 = vld [vmem:[%s2 + $0x1c] sm:$0xf]
  %v50 = vld [vmem:[%s2 + $0x20] sm:$0xf]
  %v51 = vld [vmem:[%s2 + $0x24] sm:$0xf]
  %v52 = vld [vmem:[%s2 + $0x28] sm:$0xf]
  %v53 = vld [vmem:[%s2 + $0x2c] sm:$0xf]
  %v54 = vld [vmem:[%s2 + $0x30] sm:$0xf]
  %v55 = vld [vmem:[%s2 + $0x34] sm:$0xf]
  %v56 = vld [vmem:[%s2 + $0x38] sm:$0xf]
  %v57 = vld [vmem:[%s2 + $0x3c] sm:$0xf]
  %v58 = vld [vmem:[%s3] sm:$0x1]
  %v59 = vld [vmem:[%s4] sm:$0xf]
  %v60 = vld [vmem:[%s4 + $0x4] sm:$0xf]
  %v61 = vld [vmem:[%s4 + $0x8] sm:$0xf]
  %v62 = vld [vmem:[%s4 + $0xc] sm:$0xf]
  %v63 = vld [vmem:[%s4 + $0x10] sm:$0xf]
  %v64 = vld [vmem:[%s4 + $0x14] sm:$0xf]
  %v65 = vld [vmem:[%s4 + $0x18] sm:$0xf]
  %v66 = vld [vmem:[%s4 + $0x1c] sm:$0xf]
  %v67 = vld [vmem:[%s4 + $0x20] sm:$0xf]
  %v68 = vld [vmem:[%s4 + $0x24] sm:$0xf]
  %v69 = vld [vmem:[%s4 + $0x28] sm:$0xf]
  %v70 = vld [vmem:[%s4 + $0x2c] sm:$0xf]
  %v71 = vld [vmem:[%s4 + $0x30] sm:$0xf]
  %v72 = vld [vmem:[%s4 + $0x34] sm:$0xf]
  %v73 = vld [vmem:[%s4 + $0x38] sm:$0xf]
  %v74 = vld [vmem:[%s4 + $0x3c] sm:$0xf]
  %v75 = vld [vmem:[%s5] sm:$0x1]
  %v76 = vld [vmem:[%s6] sm:$0xf]
  %v77 = vld [vmem:[%s6 + $0x4] sm:$0xf]
  %v78 = vld [vmem:[%s6 + $0x8] sm:$0xf]
  %v79 = vld [vmem:[%s6 + $0xc] sm:$0xf]
  %v80 = vld [vmem:[%s6 + $0x10] sm:$0xf]
  %v81 = vld [vmem:[%s6 + $0x14] sm:$0xf]
  %v82 = vld [vmem:[%s6 + $0x18] sm:$0xf]
  %v83 = vld [vmem:[%s6 + $0x1c] sm:$0xf]
  %v84 = vld [vmem:[%s6 + $0x20] sm:$0xf]
  %v85 = vld [vmem:[%s6 + $0x24] sm:$0xf]
  %v86 = vld [vmem:[%s6 + $0x28] sm:$0xf]
  %v87 = vld [vmem:[%s6 + $0x2c] sm:$0xf]
  %v88 = vld [vmem:[%s6 + $0x30] sm:$0xf]
  %v89 = vld [vmem:[%s6 + $0x34] sm:$0xf]
  %v90 = vld [vmem:[%s6 + $0x38] sm:$0xf]
  %v91 = vld [vmem:[%s6 + $0x3c] sm:$0xf]
  %v92 = vld [vmem:[%s7] sm:$0x1]
  %v93 = vpack.c.bf16 %v30, %v29
  %v94 = vpack.c.bf16 %v32, %v31
  %v95 = vpack.c.bf16 %v34, %v33
  %v96 = vpack.c.bf16 %v36, %v35
  %v97 = vpack.c.bf16 %v38, %v37
  %v98 = vpack.c.bf16 %v40, %v39
  %v99 = vpack.c.bf16 %v41, %v41
  %v101 = vperm.slane %v58, 0
  %v119 = vunpack.c.l.b16 %v42
  %v120 = vunpack.c.l.b16 %v43
  %v121 = vunpack.c.l.b16 %v44
  %v122 = vunpack.c.l.b16 %v45
  %v123 = vunpack.c.l.b16 %v46
  %v124 = vunpack.c.l.b16 %v47
  %v125 = vunpack.c.l.b16 %v48
  %v126 = vunpack.c.l.b16 %v49
  %v127 = vunpack.c.l.b16 %v50
  %v128 = vunpack.c.l.b16 %v51
  %v129 = vunpack.c.l.b16 %v52
  %v130 = vunpack.c.l.b16 %v53
  %v131 = vunpack.c.l.b16 %v54
  %v132 = vunpack.c.l.b16 %v55
  %v133 = vunpack.c.l.b16 %v56
  %v134 = vunpack.c.l.b16 %v57
  %v135 = vpack.c.b16 %v120, %v119
  %v136 = vpack.c.b16 %v122, %v121
  %v137 = vpack.c.b16 %v124, %v123
  %v138 = vpack.c.b16 %v126, %v125
  %v139 = vpack.c.b16 %v128, %v127
  %v140 = vpack.c.b16 %v130, %v129
  %v141 = vpack.c.b16 %v132, %v131
  %v142 = vpack.c.b16 %v134, %v133
  %151 = vmatpush.bf16.msra.mxu0 %v142
  %152 = vmatpush.bf16.msra.mxu0 %v141
  %153 = vmatpush.bf16.msra.mxu0 %v140
  %154 = vmatpush.bf16.msra.mxu0 %v139
  %155 = vmatpush.bf16.msra.mxu0 %v138
  %156 = vmatpush.bf16.msra.mxu0 %v137
  %157 = vmatpush.bf16.msra.mxu0 %v136
  %158 = vmatpush.bf16.msra.mxu0 %v135
  %159 = vmatmul.bf16.gmra.mxu0 %v93
  %v160 = vpop.f32.mrf.mxu0
  %v161 = vadd.f32 %v101, %v160
  %v162 = vpop.f32.mrf.mxu0
  %v163 = vadd.f32 %v101, %v162
  %164 = vmatmul.bf16.gmra.mxu0 %v94
  %v165 = vpop.f32.mrf.mxu0
  %v166 = vadd.f32 %v101, %v165
  %v167 = vpop.f32.mrf.mxu0
  %v168 = vadd.f32 %v101, %v167
  %169 = vmatmul.bf16.gmra.mxu0 %v95
  %v170 = vpop.f32.mrf.mxu0
  %v171 = vadd.f32 %v101, %v170
  %v172 = vpop.f32.mrf.mxu0
  %v173 = vadd.f32 %v101, %v172
  %174 = vmatmul.bf16.gmra.mxu0 %v96
  %v175 = vpop.f32.mrf.mxu0
  %v176 = vadd.f32 %v101, %v175
  %v177 = vpop.f32.mrf.mxu0
  %v178 = vadd.f32 %v101, %v177
  %179 = vmatmul.bf16.gmra.mxu0 %v97
  %v180 = vpop.f32.mrf.mxu0
  %v181 = vadd.f32 %v101, %v180
  %v182 = vpop.f32.mrf.mxu0
  %v183 = vadd.f32 %v101, %v182
  %184 = vmatmul.bf16.gmra.mxu0 %v98
  %v185 = vpop.f32.mrf.mxu0
  %v186 = vadd.f32 %v101, %v185
  %v187 = vpop.f32.mrf.mxu0
  %v188 = vadd.f32 %v101, %v187
  %189 = vmatmul.bf16.gmra.mxu0 %v99
  %v190 = vpop.f32.mrf.mxu0
  %v191 = vadd.f32 %v101, %v190
  %v192 = vpop.f32.mrf.mxu0
  %193 = vdwg.mxu0
  %v194 = vmax.f32 %v161, 0.0
  %v195 = vmax.f32 %v163, 0.0
  %v196 = vmax.f32 %v166, 0.0
  %v197 = vmax.f32 %v168, 0.0
  %v198 = vmax.f32 %v171, 0.0
  %v199 = vmax.f32 %v173, 0.0
  %v200 = vmax.f32 %v176, 0.0
  %v201 = vmax.f32 %v178, 0.0
  %v202 = vmax.f32 %v181, 0.0
  %v203 = vmax.f32 %v183, 0.0
  %v204 = vmax.f32 %v186, 0.0
  %v205 = vmax.f32 %v188, 0.0
  %v206 = vmax.f32 %v191, 0.0
  %v207 = vpack.c.bf16 %v195, %v194
  %v208 = vpack.c.bf16 %v197, %v196
  %v209 = vpack.c.bf16 %v199, %v198
  %v210 = vpack.c.bf16 %v201, %v200
  %v211 = vpack.c.bf16 %v203, %v202
  %v212 = vpack.c.bf16 %v205, %v204
  %v213 = vpack.c.bf16 %v206, %v206
  %v215 = vperm.slane %v75, 0
  %v233 = vunpack.c.l.b16 %v59
  %v234 = vunpack.c.l.b16 %v60
  %v235 = vunpack.c.l.b16 %v61
  %v236 = vunpack.c.l.b16 %v62
  %v237 = vunpack.c.l.b16 %v63
  %v238 = vunpack.c.l.b16 %v64
  %v239 = vunpack.c.l.b16 %v65
  %v240 = vunpack.c.l.b16 %v66
  %v241 = vunpack.c.l.b16 %v67
  %v242 = vunpack.c.l.b16 %v68
  %v243 = vunpack.c.l.b16 %v69
  %v244 = vunpack.c.l.b16 %v70
  %v245 = vunpack.c.l.b16 %v71
  %v246 = vunpack.c.l.b16 %v72
  %v247 = vunpack.c.l.b16 %v73
  %v248 = vunpack.c.l.b16 %v74
  %v249 = vpack.c.b16 %v234, %v233
  %v250 = vpack.c.b16 %v236, %v235
  %v251 = vpack.c.b16 %v238, %v237
  %v252 = vpack.c.b16 %v240, %v239
  %v253 = vpack.c.b16 %v242, %v241
  %v254 = vpack.c.b16 %v244, %v243
  %v255 = vpack.c.b16 %v246, %v245
  %v256 = vpack.c.b16 %v248, %v247
  %265 = vmatpush.bf16.msra.mxu0 %v256
  %266 = vmatpush.bf16.msra.mxu0 %v255
  %267 = vmatpush.bf16.msra.mxu0 %v254
  %268 = vmatpush.bf16.msra.mxu0 %v253
  %269 = vmatpush.bf16.msra.mxu0 %v252
  %270 = vmatpush.bf16.msra.mxu0 %v251
  %271 = vmatpush.bf16.msra.mxu0 %v250
  %272 = vmatpush.bf16.msra.mxu0 %v249
  %273 = vmatmul.bf16.gmra.mxu0 %v207
  %v274 = vpop.f32.mrf.mxu0
  %v275 = vadd.f32 %v215, %v274
  %v276 = vpop.f32.mrf.mxu0
  %v277 = vadd.f32 %v215, %v276
  %278 = vmatmul.bf16.gmra.mxu0 %v208
  %v279 = vpop.f32.mrf.mxu0
  %v280 = vadd.f32 %v215, %v279
  %v281 = vpop.f32.mrf.mxu0
  %v282 = vadd.f32 %v215, %v281
  %283 = vmatmul.bf16.gmra.mxu0 %v209
  %v284 = vpop.f32.mrf.mxu0
  %v285 = vadd.f32 %v215, %v284
  %v286 = vpop.f32.mrf.mxu0
  %v287 = vadd.f32 %v215, %v286
  %288 = vmatmul.bf16.gmra.mxu0 %v210
  %v289 = vpop.f32.mrf.mxu0
  %v290 = vadd.f32 %v215, %v289
  %v291 = vpop.f32.mrf.mxu0
  %v292 = vadd.f32 %v215, %v291
  %293 = vmatmul.bf16.gmra.mxu0 %v211
  %v294 = vpop.f32.mrf.mxu0
  %v295 = vadd.f32 %v215, %v294
  %v296 = vpop.f32.mrf.mxu0
  %v297 = vadd.f32 %v215, %v296
  %298 = vmatmul.bf16.gmra.mxu0 %v212
  %v299 = vpop.f32.mrf.mxu0
  %v300 = vadd.f32 %v215, %v299
  %v301 = vpop.f32.mrf.mxu0
  %v302 = vadd.f32 %v215, %v301
  %303 = vmatmul.bf16.gmra.mxu0 %v213
  %v304 = vpop.f32.mrf.mxu0
  %v305 = vadd.f32 %v215, %v304
  %v306 = vpop.f32.mrf.mxu0
  %307 = vdwg.mxu0
  %v308 = vmax.f32 %v275, 0.0
  %v309 = vmax.f32 %v277, 0.0
  %v310 = vmax.f32 %v280, 0.0
  %v311 = vmax.f32 %v282, 0.0
  %v312 = vmax.f32 %v285, 0.0
  %v313 = vmax.f32 %v287, 0.0
  %v314 = vmax.f32 %v290, 0.0
  %v315 = vmax.f32 %v292, 0.0
  %v316 = vmax.f32 %v295, 0.0
  %v317 = vmax.f32 %v297, 0.0
  %v318 = vmax.f32 %v300, 0.0
  %v319 = vmax.f32 %v302, 0.0
  %v320 = vmax.f32 %v305, 0.0
  %v321 = vpack.c.bf16 %v309, %v308
  %v322 = vpack.c.bf16 %v311, %v310
  %v323 = vpack.c.bf16 %v313, %v312
  %v324 = vpack.c.bf16 %v315, %v314
  %v325 = vpack.c.bf16 %v317, %v316
  %v326 = vpack.c.bf16 %v319, %v318
  %v327 = vpack.c.bf16 %v320, %v320
  %v329 = vperm.slane %v92, 0
  %v347 = vunpack.c.l.b16 %v76
  %v348 = vunpack.c.l.b16 %v77
  %v349 = vunpack.c.l.b16 %v78
  %v350 = vunpack.c.l.b16 %v79
  %v351 = vunpack.c.l.b16 %v80
  %v352 = vunpack.c.l.b16 %v81
  %v353 = vunpack.c.l.b16 %v82
  %v354 = vunpack.c.l.b16 %v83
  %v355 = vunpack.c.l.b16 %v84
  %v356 = vunpack.c.l.b16 %v85
  %v357 = vunpack.c.l.b16 %v86
  %v358 = vunpack.c.l.b16 %v87
  %v359 = vunpack.c.l.b16 %v88
  %v360 = vunpack.c.l.b16 %v89
  %v361 = vunpack.c.l.b16 %v90
  %v362 = vunpack.c.l.b16 %v91
  %v363 = vpack.c.b16 %v348, %v347
  %v364 = vpack.c.b16 %v350, %v349
  %v365 = vpack.c.b16 %v352, %v351
  %v366 = vpack.c.b16 %v354, %v353
  %v367 = vpack.c.b16 %v356, %v355
  %v368 = vpack.c.b16 %v358, %v357
  %v369 = vpack.c.b16 %v360, %v359
  %v370 = vpack.c.b16 %v362, %v361
  %379 = vmatpush.bf16.msra.mxu0 %v370
  %380 = vmatpush.bf16.msra.mxu0 %v369
  %381 = vmatpush.bf16.msra.mxu0 %v368
  %382 = vmatpush.bf16.msra.mxu0 %v367
  %383 = vmatpush.bf16.msra.mxu0 %v366
  %384 = vmatpush.bf16.msra.mxu0 %v365
  %385 = vmatpush.bf16.msra.mxu0 %v364
  %386 = vmatpush.bf16.msra.mxu0 %v363
  %387 = vmatmul.bf16.gmra.mxu0 %v321
  %v388 = vpop.f32.mrf.mxu0
  %v389 = vadd.f32 %v329, %v388
  %v390 = vpop.f32.mrf.mxu0
  %v391 = vadd.f32 %v329, %v390
  %392 = vmatmul.bf16.gmra.mxu0 %v322
  %v393 = vpop.f32.mrf.mxu0
  %v394 = vadd.f32 %v329, %v393
  %v395 = vpop.f32.mrf.mxu0
  %v396 = vadd.f32 %v329, %v395
  %397 = vmatmul.bf16.gmra.mxu0 %v323
  %v398 = vpop.f32.mrf.mxu0
  %v399 = vadd.f32 %v329, %v398
  %v400 = vpop.f32.mrf.mxu0
  %v401 = vadd.f32 %v329, %v400
  %402 = vmatmul.bf16.gmra.mxu0 %v324
  %v403 = vpop.f32.mrf.mxu0
  %v404 = vadd.f32 %v329, %v403
  %v405 = vpop.f32.mrf.mxu0
  %v406 = vadd.f32 %v329, %v405
  %407 = vmatmul.bf16.gmra.mxu0 %v325
  %v408 = vpop.f32.mrf.mxu0
  %v409 = vadd.f32 %v329, %v408
  %v410 = vpop.f32.mrf.mxu0
  %v411 = vadd.f32 %v329, %v410
  %412 = vmatmul.bf16.gmra.mxu0 %v326
  %v413 = vpop.f32.mrf.mxu0
  %v414 = vadd.f32 %v329, %v413
  %v415 = vpop.f32.mrf.mxu0
  %v416 = vadd.f32 %v329, %v415
  %417 = vmatmul.bf16.gmra.mxu0 %v327
  %v418 = vpop.f32.mrf.mxu0
  %v419 = vadd.f32 %v329, %v418
  %v420 = vpop.f32.mrf.mxu0
  %421 = vdwg.mxu0
  %v422 = vld [vmem:[%s1] sm:$0xff]
  %v423 = vld [vmem:[%s1 + $0x8] sm:$0xff]
  %v424 = vld [vmem:[%s1 + $0x10] sm:$0xff]
  %v425 = vld [vmem:[%s1 + $0x18] sm:$0xff]
  %v426 = vld [vmem:[%s1 + $0x20] sm:$0xff]
  %v427 = vld [vmem:[%s1 + $0x28] sm:$0xff]
  %v428 = vld [vmem:[%s1 + $0x30] sm:$0xff]
  %v429 = vld [vmem:[%s1 + $0x38] sm:$0xff]
  %v430 = vld [vmem:[%s1 + $0x40] sm:$0xff]
  %v431 = vld [vmem:[%s1 + $0x48] sm:$0xff]
  %v432 = vld [vmem:[%s1 + $0x50] sm:$0xff]
  %v433 = vld [vmem:[%s1 + $0x58] sm:$0xff]
  %v434 = vld [vmem:[%s1 + $0x60] sm:$0xff]
  %v435 = vadd.f32 %v422, %v389
  %v436 = vadd.f32 %v423, %v391
  %v437 = vadd.f32 %v424, %v394
  %v438 = vadd.f32 %v425, %v396
  %v439 = vadd.f32 %v426, %v399
  %v440 = vadd.f32 %v427, %v401
  %v441 = vadd.f32 %v428, %v404
  %v442 = vadd.f32 %v429, %v406
  %v443 = vadd.f32 %v430, %v409
  %v444 = vadd.f32 %v431, %v411
  %v445 = vadd.f32 %v432, %v414
  %v446 = vadd.f32 %v433, %v416
  %v447 = vadd.f32 %v434, %v419
  %448 = vst [vmem:[%s8] sm:$0xff] %v435
  %449 = vst [vmem:[%s8 + $0x8] sm:$0xff] %v436
  %450 = vst [vmem:[%s8 + $0x10] sm:$0xff] %v437
  %451 = vst [vmem:[%s8 + $0x18] sm:$0xff] %v438
  %452 = vst [vmem:[%s8 + $0x20] sm:$0xff] %v439
  %453 = vst [vmem:[%s8 + $0x28] sm:$0xff] %v440
  %454 = vst [vmem:[%s8 + $0x30] sm:$0xff] %v441
  %455 = vst [vmem:[%s8 + $0x38] sm:$0xff] %v442
  %456 = vst [vmem:[%s8 + $0x40] sm:$0xff] %v443
  %457 = vst [vmem:[%s8 + $0x48] sm:$0xff] %v444
  %458 = vst [vmem:[%s8 + $0x50] sm:$0xff] %v445
  %459 = vst [vmem:[%s8 + $0x58] sm:$0xff] %v446
  %460 = vst [vmem:[%s8 + $0x60] sm:$0xff] %v447
  // Predicated region
  $region34: #{closed_call.25} parent=0 // pred_check
    _
  $region35: #{closed_call.25} parent=0 // pred_check_branch
    %462 = sbr.rel (0) target = $region37
  $region36: #{closed_call.25} parent=0 // pred_region
    _
  $region37: #{closed_call.25} parent=0 // pred_fallthru
    _
  // Predicated region
  $region38: #{closed_call.25} parent=0 // pred_check
    _
  $region39: #{closed_call.25} parent=0 // pred_check_branch
    %464 = sbr.rel (0) target = $region41
  $region40: #{closed_call.25} parent=0 // pred_region
    _
  $region41: #{closed_call.25} parent=0 // pred_fallthru
    _

// kernel: squeeze.15
$region0: #{squeeze.15}
  %s0 = inlined_call_operand.vmem [shape: f32[1,100,8], index: 0, kind: input, shape index: {}]
  %s1 = inlined_call_operand.vmem [shape: f32[2,50,8], index: 1, kind: output, shape index: {}]
  $region1: #{squeeze.15} parent=0
    #allocation0 [shape = 'u8[32768]{0}', space=vmem, size = 0x8000, scoped, tag = 'scoped mem for output reshape']
    %v2 = vld [vmem:[%s0] sm:$0xff]
    %vm3 = vcmask 408576
    %4 = vst.msk [vmem:[#allocation0] ss:$8 sm:$0xf] %vm3, %v2
    %5 = vst.msk [vmem:[#allocation0] ss:$8 sm:$0xf0] %vm3, %v2
    %v6 = vld [vmem:[%s0] sm:$0xff]
    %7 = vrot.lane.b32.xlu0 %v6, 78
    %v8 = vpop.permute.xlu0 %7
    %vm9 = vcmask 408576
    %s10 = scalar_lea.vmem [#allocation0], 1
    %11 = vst.msk [vmem:[%s10] ss:$8 sm:$0xf] %vm9, %v8
    %s12 = scalar_lea.vmem [#allocation0], 1
    %13 = vst.msk [vmem:[%s12] ss:$8 sm:$0xf0] %vm9, %v8
    %s15 = ssub.s32 4, 1
    %v16 = vld [vmem:[#allocation0] sm:%s15]
    %s18 = ssub.s32 4, 1
    %19 = vst [vmem:[%s1] sm:%s18] %v16
    %s20 = scalar_lea.vmem [#allocation0], 8
    %v21 = vld [vmem:[%s20] sm:%s15]
    %s23 = ssub.s32 4, 1
    %s24 = scalar_lea.vmem %s1, 2
    %25 = vst [vmem:[%s24] sm:%s23] %v21
    %s26 = scalar_lea.vmem [#allocation0], 16
    %v27 = vld [vmem:[%s26] sm:%s15]
    %s29 = ssub.s32 4, 1
    %s30 = scalar_lea.vmem %s1, 4
    %31 = vst [vmem:[%s30] sm:%s29] %v27
    %s32 = scalar_lea.vmem [#allocation0], 24
    %v33 = vld [vmem:[%s32] sm:%s15]
    %s35 = ssub.s32 4, 1
    %s36 = scalar_lea.vmem %s1, 6
    %37 = vst [vmem:[%s36] sm:%s35] %v33
    %s38 = scalar_lea.vmem [#allocation0], 32
    %v39 = vld [vmem:[%s38] sm:%s15]
    %s41 = ssub.s32 4, 1
    %s42 = scalar_lea.vmem %s1, 8
    %43 = vst [vmem:[%s42] sm:%s41] %v39
    %s44 = scalar_lea.vmem [#allocation0], 40
    %v45 = vld [vmem:[%s44] sm:%s15]
    %s47 = ssub.s32 4, 1
    %s48 = scalar_lea.vmem %s1, 10
    %49 = vst [vmem:[%s48] sm:%s47] %v45
    %s50 = scalar_lea.vmem [#allocation0], 48
    %v51 = vld [vmem:[%s50] sm:%s15]
    %s53 = ssub.s32 4, 1
    %s54 = scalar_lea.vmem %s1, 12
    %55 = vst [vmem:[%s54] sm:%s53] %v51
    %s56 = scalar_lea.vmem [#allocation0], 56
    %v57 = vld [vmem:[%s56] sm:%s15]
    %s59 = ssub.s32 4, 1
    %s60 = scalar_lea.vmem %s1, 14
    %61 = vst [vmem:[%s60] sm:%s59] %v57

</llo_original>
